<compile_context>
chip_gen: v5e
topology: v5e:2x2
jax: 0.10.0
libtpu: 0.0.40
codegen_flags: <defaults>
</compile_context>

<pallas_src>
import functools

import jax
import jax.numpy as jnp
import numpy as np
from jax.experimental import pallas as pl
from jax.experimental.pallas import tpu as pltpu


def _dwconv_kernel(x_ref, w_ref, col_ref, o_ref, *, K, dilation, width, H, W):
    """Depthwise conv along W for one (TBN, C_TILE, H*W) block.

    x_ref:   (TBN, C_TILE, H*W)  input rows, lane-flattened (VMEM)
    w_ref:   (C_TILE, K)         per-channel taps, f32 (VMEM)
    col_ref: (1, 1, H*W)         column index of each lane (p -> p % W), i32
    o_ref:   (TBN, C_TILE, H*W)  output (W_out == W by construction)
    """
    HW = H * W
    x = x_ref[...]
    if x.dtype != jnp.float32:
        x = x.astype(jnp.float32)                 # convert once, not per tap
    wt = w_ref[...]                               # (C_TILE, K) f32
    col = col_ref[...]                            # (1, 1, HW) i32

    # Halo along W, built as a traced lane-concat (no scratch ref, no extra
    # VMEM store competing with the output store on v5e's single vst slot).
    if width > 0:
        zpad = jnp.zeros(x.shape[:-1] + (width,), jnp.float32)
        xp = jnp.concatenate([zpad, x, zpad], axis=-1)   # (..., HW + 2*width)
    else:
        xp = x

    # K is small & static here: unrolled tap loop.
    # TODO(synk): for large K switch to lax.fori_loop(unroll=True) (vreg
    # pressure) or a banded-Toeplitz MXU matmul (VALU/HBM crossover ~K>=16 on
    # v6e, earlier on v7x).
    acc = None
    for k in range(K):
        s = k * dilation - width                  # static shift of this tap
        xk = xp[..., k * dilation:k * dilation + HW] if width > 0 else x
        # Zero lanes whose source column falls outside this row.
        if s < 0:
            xk = jnp.where(col >= -s, xk, 0.0)
        elif s > 0:
            xk = jnp.where(col < W - s, xk, 0.0)
        tap = wt[:, k:k + 1][None, :, :]          # (1, C_TILE, 1) lane broadcast
        term = xk * tap
        acc = term if acc is None else acc + term
    o_ref[...] = acc.astype(o_ref.dtype)


def _vmem_budget_bytes():
    cap = None
    try:
        cap = getattr(pltpu.get_tpu_info(), "vmem_capacity_bytes", None)
    except Exception:
        cap = None
    if not cap:
        cap = 64 * 1024 * 1024                    # conservative (v7x physical)
    return max(16 * 1024 * 1024, int(cap) // 2)


def big_conv(x, weight, *, width, stride=1, dilation=1):
    """Depthwise conv along W, matching
    nn.Conv2d(C, C, (1, K), dilation=dilation, stride=stride,
              padding=(0, width), groups=C, bias=False), K = 2*(width//dilation)+1.

    x: (N, C, H, W) NCHW;  weight: (C, 1, 1, K) PyTorch depthwise layout.
    """
    N, C, H, W = x.shape
    K = 2 * (width // dilation) + 1
    assert weight.shape == (C, 1, 1, K), weight.shape
    if stride != 1:
        # TODO(synk): strided lane gather not implemented; module default is stride=1.
        raise NotImplementedError("stride != 1 not supported in this kernel")

    W_out = W + 2 * width - dilation * (K - 1)
    # Reduce width % dilation != 0 (W_out > W) to the aligned case with a tiny
    # wrapper pad; after that W_out == the (padded) input width and a single
    # kernel covers every config.
    r = width % dilation
    if r:
        x = jnp.pad(x, ((0, 0), (0, 0), (0, 0), (r, r)))
    width_eff = width - r
    W_eff = W + 2 * r
    assert W_out == W_eff

    HW = H * W_eff
    itemsize = jnp.dtype(x.dtype).itemsize
    x_flat = x.reshape(N, C, HW)                         # free: contiguous
    w2 = weight.reshape(C, K).astype(jnp.float32)
    col = jnp.asarray(
        np.tile(np.arange(W_eff, dtype=np.int32), H).reshape(1, 1, HW))

    # ---- tiling -------------------------------------------------------------
    budget = _vmem_budget_bytes()
    # per (n, c) plane: double-buffered in + out blocks + f32 temporaries.
    per_plane = 2 * 2 * HW * itemsize + 4 * HW * 4
    max_planes = max(1, budget // per_plane)
    sub = 8 * max(1, 4 // itemsize)                      # sublane tile for dtype
    if C <= max_planes or C < sub:
        c_tile = C
    else:
        c_tile = min((C // sub) * sub, max(sub, (max_planes // sub) * sub))
    tbn = max(1, min(N, max_planes // max(c_tile, 1)))
    num_cblk = pl.cdiv(C, c_tile)
    num_nblk = pl.cdiv(N, tbn)
    # Keep >= 2 parallel blocks when there is work to split (v7x has 2 TCs).
    if num_cblk * num_nblk < 2:
        if N >= 2:
            tbn = (N + 1) // 2
            num_nblk = pl.cdiv(N, tbn)
        elif C >= 2 * sub:
            c_tile = max(sub, ((C // 2) // sub) * sub)
            num_cblk = pl.cdiv(C, c_tile)

    kernel = functools.partial(_dwconv_kernel, K=K, dilation=dilation,
                               width=width_eff, H=H, W=W_eff)

    out_flat = pl.pallas_call(
        kernel,
        out_shape=jax.ShapeDtypeStruct((N, C, HW), x.dtype),
        grid_spec=pltpu.PrefetchScalarGridSpec(
            num_scalar_prefetch=0,
            # batch axis fastest -> the weight/col blocks are reused across
            # consecutive grid steps.
            grid=(num_cblk, num_nblk),
            in_specs=[
                # TODO(synk): sweep pipeline_mode=pl.Buffered(3) here if xprof
                # shows exposed input DMA on large shapes.
                pl.BlockSpec((tbn, c_tile, HW), lambda ci, ni: (ni, ci, 0)),
                pl.BlockSpec((c_tile, K), lambda ci, ni: (ci, 0)),
                pl.BlockSpec((1, 1, HW), lambda ci, ni: (0, 0, 0)),
            ],
            out_specs=pl.BlockSpec((tbn, c_tile, HW), lambda ci, ni: (ni, ci, 0)),
        ),
        compiler_params=pltpu.CompilerParams(
            dimension_semantics=("parallel", "parallel"),
            vmem_limit_bytes=int(budget)),
    )(x_flat, w2, col)
    return out_flat.reshape(N, C, H, W_out)


def _reference_np(x, weight, *, width, stride=1, dilation=1):
    """Exact f64 numpy reference for the depthwise conv."""
    x = np.asarray(x, np.float64)
    w = np.asarray(weight, np.float64)
    N, C, H, W = x.shape
    K = w.shape[-1]
    xp = np.zeros((N, C, H, W + 2 * width), np.float64)
    xp[..., width:width + W] = x
    W_out = (W + 2 * width - dilation * (K - 1) - 1) // stride + 1
    out = np.zeros((N, C, H, W_out), np.float64)
    for wo in range(W_out):
        acc = np.zeros((N, C, H), np.float64)
        for k in range(K):
            acc = acc + w[:, 0, 0, k][None, :, None] * xp[..., wo * stride + k * dilation]
        out[..., wo] = acc
    return out


if __name__ == "__main__":
    key = jax.random.PRNGKey(0)
    N, C, H, W = 2, 4, 8, 16
    kx, kw = jax.random.split(key)
    x = jax.random.normal(kx, (N, C, H, W), dtype=jnp.float32)

    configs = [
        dict(width=3, dilation=1),   # K = 7, "same" conv (primary config)
        dict(width=4, dilation=2),   # K = 5, dilated
        dict(width=3, dilation=2),   # K = 3, width % dilation != 0 (wider out)
    ]
    for i, cfg in enumerate(configs):
        K = 2 * (cfg["width"] // cfg["dilation"]) + 1
        wk = jax.random.fold_in(kw, i)
        weight = jax.random.normal(wk, (C, 1, 1, K), dtype=jnp.float32) * 0.1
        out = big_conv(x, weight, stride=1, **cfg)
        out = jax.block_until_ready(out)
        ref = _reference_np(x, weight, stride=1, **cfg)
        assert out.shape == ref.shape, (cfg, out.shape, ref.shape)
        np.testing.assert_allclose(np.asarray(out, np.float64), ref,
                                   rtol=1e-5, atol=1e-5)

    print("KERNEL_OK")
</pallas_src>

<mosaic_0001>
module attributes {stable_mosaic.version = 11 : i64} {
  func.func @_dwconv_kernel(%arg0: i32, %arg1: i32, %arg2: memref<1x4x128xf32, #tpu.memory_space<vmem>>, %arg3: memref<4x7xf32, #tpu.memory_space<vmem>>, %arg4: memref<1x1x128xi32, #tpu.memory_space<vmem>>, %arg5: memref<1x4x128xf32, #tpu.memory_space<vmem>>) attributes {dimension_semantics = [#tpu.dimension_semantics<parallel>, #tpu.dimension_semantics<parallel>], iteration_bounds = array<i64: 1, 2>, scalar_prefetch = 0 : i64, scratch_operands = 0 : i64, tpu.core_type = #tpu.core_type<tc>, window_params = [{transform_indices = @transform_0, window_bounds = array<i64: 1, 4, 128>}, {transform_indices = @transform_1, window_bounds = array<i64: 4, 7>}, {pipeline_mode = #tpu.pipeline_mode<synchronous>, transform_indices = @transform_2, window_bounds = array<i64: 1, 1, 128>}, {transform_indices = @transform_3, window_bounds = array<i64: 1, 4, 128>}]} {
    %c0 = arith.constant 0 : index
    %c0_0 = arith.constant 0 : index
    %c0_1 = arith.constant 0 : index
    %0 = vector.load %arg2[%c0, %c0_0, %c0_1] : memref<1x4x128xf32, #tpu.memory_space<vmem>>, vector<1x4x128xf32>
    %c0_2 = arith.constant 0 : index
    %c0_3 = arith.constant 0 : index
    %1 = vector.load %arg3[%c0_2, %c0_3] : memref<4x7xf32, #tpu.memory_space<vmem>>, vector<4x7xf32>
    %c0_4 = arith.constant 0 : index
    %c0_5 = arith.constant 0 : index
    %c0_6 = arith.constant 0 : index
    %2 = vector.load %arg4[%c0_4, %c0_5, %c0_6] : memref<1x1x128xi32, #tpu.memory_space<vmem>>, vector<1x1x128xi32>
    %cst = arith.constant 0.000000e+00 : f32
    %3 = vector.broadcast %cst : f32 to vector<1x4x3xf32>
    %4 = tpu.concatenate %3, %0, %3 in 2 : vector<1x4x3xf32>, vector<1x4x128xf32>, vector<1x4x3xf32> -> vector<1x4x134xf32>
    %5 = vector.extract_strided_slice %4 {offsets = [0, 0, 0], sizes = [1, 4, 128], strides = [1, 1, 1]} : vector<1x4x134xf32> to vector<1x4x128xf32>
    %c3_i32 = arith.constant 3 : i32
    %6 = vector.broadcast %c3_i32 : i32 to vector<1x1x128xi32>
    %7 = arith.cmpi sge, %2, %6 : vector<1x1x128xi32>
    %cst_7 = arith.constant 0.000000e+00 : f32
    %8 = vector.shape_cast %7 : vector<1x1x128xi1> to vector<1x1x128xi1>
    %9 = vector.broadcast %8 : vector<1x1x128xi1> to vector<1x4x128xi1>
    %10 = vector.broadcast %cst_7 : f32 to vector<1x4x128xf32>
    %11 = arith.select %9, %5, %10 : vector<1x4x128xi1>, vector<1x4x128xf32>
    %12 = vector.extract_strided_slice %1 {offsets = [0, 0], sizes = [4, 1], strides = [1, 1]} : vector<4x7xf32> to vector<4x1xf32>
    %13 = vector.shape_cast %12 : vector<4x1xf32> to vector<1x4x1xf32>
    %14 = vector.broadcast %13 : vector<1x4x1xf32> to vector<1x4x128xf32>
    %15 = arith.mulf %11, %14 : vector<1x4x128xf32>
    %16 = vector.extract_strided_slice %4 {offsets = [0, 0, 1], sizes = [1, 4, 128], strides = [1, 1, 1]} : vector<1x4x134xf32> to vector<1x4x128xf32>
    %c2_i32 = arith.constant 2 : i32
    %17 = vector.broadcast %c2_i32 : i32 to vector<1x1x128xi32>
    %18 = arith.cmpi sge, %2, %17 : vector<1x1x128xi32>
    %cst_8 = arith.constant 0.000000e+00 : f32
    %19 = vector.shape_cast %18 : vector<1x1x128xi1> to vector<1x1x128xi1>
    %20 = vector.broadcast %19 : vector<1x1x128xi1> to vector<1x4x128xi1>
    %21 = vector.broadcast %cst_8 : f32 to vector<1x4x128xf32>
    %22 = arith.select %20, %16, %21 : vector<1x4x128xi1>, vector<1x4x128xf32>
    %23 = vector.extract_strided_slice %1 {offsets = [0, 1], sizes = [4, 1], strides = [1, 1]} : vector<4x7xf32> to vector<4x1xf32>
    %24 = vector.shape_cast %23 : vector<4x1xf32> to vector<1x4x1xf32>
    %25 = vector.broadcast %24 : vector<1x4x1xf32> to vector<1x4x128xf32>
    %26 = arith.mulf %22, %25 : vector<1x4x128xf32>
    %27 = arith.addf %15, %26 : vector<1x4x128xf32>
    %28 = vector.extract_strided_slice %4 {offsets = [0, 0, 2], sizes = [1, 4, 128], strides = [1, 1, 1]} : vector<1x4x134xf32> to vector<1x4x128xf32>
    %c1_i32 = arith.constant 1 : i32
    %29 = vector.broadcast %c1_i32 : i32 to vector<1x1x128xi32>
    %30 = arith.cmpi sge, %2, %29 : vector<1x1x128xi32>
    %cst_9 = arith.constant 0.000000e+00 : f32
    %31 = vector.shape_cast %30 : vector<1x1x128xi1> to vector<1x1x128xi1>
    %32 = vector.broadcast %31 : vector<1x1x128xi1> to vector<1x4x128xi1>
    %33 = vector.broadcast %cst_9 : f32 to vector<1x4x128xf32>
    %34 = arith.select %32, %28, %33 : vector<1x4x128xi1>, vector<1x4x128xf32>
    %35 = vector.extract_strided_slice %1 {offsets = [0, 2], sizes = [4, 1], strides = [1, 1]} : vector<4x7xf32> to vector<4x1xf32>
    %36 = vector.shape_cast %35 : vector<4x1xf32> to vector<1x4x1xf32>
    %37 = vector.broadcast %36 : vector<1x4x1xf32> to vector<1x4x128xf32>
    %38 = arith.mulf %34, %37 : vector<1x4x128xf32>
    %39 = arith.addf %27, %38 : vector<1x4x128xf32>
    %40 = vector.extract_strided_slice %4 {offsets = [0, 0, 3], sizes = [1, 4, 128], strides = [1, 1, 1]} : vector<1x4x134xf32> to vector<1x4x128xf32>
    %41 = vector.extract_strided_slice %1 {offsets = [0, 3], sizes = [4, 1], strides = [1, 1]} : vector<4x7xf32> to vector<4x1xf32>
    %42 = vector.shape_cast %41 : vector<4x1xf32> to vector<1x4x1xf32>
    %43 = vector.broadcast %42 : vector<1x4x1xf32> to vector<1x4x128xf32>
    %44 = arith.mulf %40, %43 : vector<1x4x128xf32>
    %45 = arith.addf %39, %44 : vector<1x4x128xf32>
    %46 = vector.extract_strided_slice %4 {offsets = [0, 0, 4], sizes = [1, 4, 128], strides = [1, 1, 1]} : vector<1x4x134xf32> to vector<1x4x128xf32>
    %c15_i32 = arith.constant 15 : i32
    %47 = vector.broadcast %c15_i32 : i32 to vector<1x1x128xi32>
    %48 = arith.cmpi slt, %2, %47 : vector<1x1x128xi32>
    %cst_10 = arith.constant 0.000000e+00 : f32
    %49 = vector.shape_cast %48 : vector<1x1x128xi1> to vector<1x1x128xi1>
    %50 = vector.broadcast %49 : vector<1x1x128xi1> to vector<1x4x128xi1>
    %51 = vector.broadcast %cst_10 : f32 to vector<1x4x128xf32>
    %52 = arith.select %50, %46, %51 : vector<1x4x128xi1>, vector<1x4x128xf32>
    %53 = vector.extract_strided_slice %1 {offsets = [0, 4], sizes = [4, 1], strides = [1, 1]} : vector<4x7xf32> to vector<4x1xf32>
    %54 = vector.shape_cast %53 : vector<4x1xf32> to vector<1x4x1xf32>
    %55 = vector.broadcast %54 : vector<1x4x1xf32> to vector<1x4x128xf32>
    %56 = arith.mulf %52, %55 : vector<1x4x128xf32>
    %57 = arith.addf %45, %56 : vector<1x4x128xf32>
    %58 = vector.extract_strided_slice %4 {offsets = [0, 0, 5], sizes = [1, 4, 128], strides = [1, 1, 1]} : vector<1x4x134xf32> to vector<1x4x128xf32>
    %c14_i32 = arith.constant 14 : i32
    %59 = vector.broadcast %c14_i32 : i32 to vector<1x1x128xi32>
    %60 = arith.cmpi slt, %2, %59 : vector<1x1x128xi32>
    %cst_11 = arith.constant 0.000000e+00 : f32
    %61 = vector.shape_cast %60 : vector<1x1x128xi1> to vector<1x1x128xi1>
    %62 = vector.broadcast %61 : vector<1x1x128xi1> to vector<1x4x128xi1>
    %63 = vector.broadcast %cst_11 : f32 to vector<1x4x128xf32>
    %64 = arith.select %62, %58, %63 : vector<1x4x128xi1>, vector<1x4x128xf32>
    %65 = vector.extract_strided_slice %1 {offsets = [0, 5], sizes = [4, 1], strides = [1, 1]} : vector<4x7xf32> to vector<4x1xf32>
    %66 = vector.shape_cast %65 : vector<4x1xf32> to vector<1x4x1xf32>
    %67 = vector.broadcast %66 : vector<1x4x1xf32> to vector<1x4x128xf32>
    %68 = arith.mulf %64, %67 : vector<1x4x128xf32>
    %69 = arith.addf %57, %68 : vector<1x4x128xf32>
    %70 = vector.extract_strided_slice %4 {offsets = [0, 0, 6], sizes = [1, 4, 128], strides = [1, 1, 1]} : vector<1x4x134xf32> to vector<1x4x128xf32>
    %c13_i32 = arith.constant 13 : i32
    %71 = vector.broadcast %c13_i32 : i32 to vector<1x1x128xi32>
    %72 = arith.cmpi slt, %2, %71 : vector<1x1x128xi32>
    %cst_12 = arith.constant 0.000000e+00 : f32
    %73 = vector.shape_cast %72 : vector<1x1x128xi1> to vector<1x1x128xi1>
    %74 = vector.broadcast %73 : vector<1x1x128xi1> to vector<1x4x128xi1>
    %75 = vector.broadcast %cst_12 : f32 to vector<1x4x128xf32>
    %76 = arith.select %74, %70, %75 : vector<1x4x128xi1>, vector<1x4x128xf32>
    %77 = vector.extract_strided_slice %1 {offsets = [0, 6], sizes = [4, 1], strides = [1, 1]} : vector<4x7xf32> to vector<4x1xf32>
    %78 = vector.shape_cast %77 : vector<4x1xf32> to vector<1x4x1xf32>
    %79 = vector.broadcast %78 : vector<1x4x1xf32> to vector<1x4x128xf32>
    %80 = arith.mulf %76, %79 : vector<1x4x128xf32>
    %81 = arith.addf %69, %80 : vector<1x4x128xf32>
    %c0_13 = arith.constant 0 : index
    %c0_14 = arith.constant 0 : index
    %c0_15 = arith.constant 0 : index
    %82 = vector.load %arg5[%c0_13, %c0_14, %c0_15] : memref<1x4x128xf32, #tpu.memory_space<vmem>>, vector<1x4x128xf32>
    tpu.vector_store %arg5[%c0_13, %c0_14, %c0_15], %81 {strides = array<i32>} : memref<1x4x128xf32, #tpu.memory_space<vmem>>, vector<1x4x128xf32>,
    return
  }
  func.func @transform_0(%arg0: i32, %arg1: i32) -> (i32, i32, i32) {
    %c0_i32 = arith.constant 0 : i32
    %c0_i32_0 = arith.constant 0 : i32
    return %arg1, %arg0, %c0_i32 : i32, i32, i32
  }
  func.func @transform_1(%arg0: i32, %arg1: i32) -> (i32, i32) {
    %c0_i32 = arith.constant 0 : i32
    %c0_i32_0 = arith.constant 0 : i32
    return %arg0, %c0_i32 : i32, i32
  }
  func.func @transform_2(%arg0: i32, %arg1: i32) -> (i32, i32, i32) {
    %c0_i32 = arith.constant 0 : i32
    %c0_i32_0 = arith.constant 0 : i32
    %c0_i32_1 = arith.constant 0 : i32
    %c0_i32_2 = arith.constant 0 : i32
    return %c0_i32, %c0_i32_0, %c0_i32_1 : i32, i32, i32
  }
  func.func @transform_3(%arg0: i32, %arg1: i32) -> (i32, i32, i32) {
    %c0_i32 = arith.constant 0 : i32
    %c0_i32_0 = arith.constant 0 : i32
    return %arg1, %arg0, %c0_i32 : i32, i32, i32
  }
}

</mosaic_0001>

<llo_original>
// kernel: tpu_custom_call.1
$region0: #{tpu_custom_call.1}
  #allocation0 [shape = 'u32[]', space=smem, size = 0x4, offset = 0x4, fixed_abs, tag = 'smem constant byte address 0x4 - core index']
  #allocation1 [shape = 'u32[72,128]{1,0:T(1,128)}', space=vmem, size = 0x9000, scoped, tag = 'internal scratch']
  %s0 = inlined_call_operand.hbm [shape: f32[2,4,128], index: 0, kind: input, shape index: {}]
  %s1 = inlined_call_operand.hbm [shape: f32[4,7], index: 1, kind: input, shape index: {}]
  %s2 = inlined_call_operand.vmem [shape: s32[1,1,128], index: 2, kind: input, shape index: {}]
  %s3 = inlined_call_operand.hbm [shape: f32[2,4,128], index: 3, kind: output, shape index: {}]
  %s4 = sld [smem:[#allocation0]]
  $region53: #{tpu_custom_call.1} parent=0
    _
  %s6 = ssub.s32 1, %s4
  %s7 = scalar_select 0, %s6, %s4
  $region1: #{tpu_custom_call.1} parent=0
    #allocation2 [shape = 'u8[4096]{0}', space=vmem, size = 0x1000, scoped, tag = 'input window, operand 0']
    #allocation3 [shape = 's32[2]{0}', space=sflag, size = 0x8, scoped, tag = 'scoped memory for tpu_custom_call.1']
    #allocation4 [shape = 's32[2]{0}', space=sflag, size = 0x8, scoped, tag = 'scoped memory for tpu_custom_call.1']
    #allocation5 [shape = 'u8[2048]{0}', space=vmem, size = 0x800, scoped, tag = 'input window, operand 1, single buffered']
    #allocation6 [shape = 's32[1]{0}', space=sflag, size = 0x4, scoped, tag = 'scoped memory for tpu_custom_call.1']
    #allocation7 [shape = 'u8[4096]{0}', space=vmem, size = 0x1000, scoped, tag = 'output window, operand 0']
    %8 = vsyncpa [#allocation3], 0
    %s9 = scalar_lea.sflag [#allocation3], 1
    %10 = vsyncpa %s9, 0
    %11 = vsyncpa [#allocation6], 0
    %12 = vsyncpa [#allocation4], 0
    %s13 = scalar_lea.sflag [#allocation4], 1
    %14 = vsyncpa %s13, 0
    loop: start=0, step=1, limit=4
    $region2: #{tpu_custom_call.1} parent=1 // loop_pre_header
      _
    $region3: #{tpu_custom_call.1} parent=1 // loop_header
      %s16 = sphi 0, %s20
      %p17 = scmp.ge.s32.totalorder %s16, 4
      %s23 = sphi 0, %s35
      %s24 = sphi 0, %s31
      %s25 = sphi 0, %s23
      %s26 = sphi 0, %s24
      %s27 = sphi 0, %s25
      %s28 = sphi 0, %s26
      %s40 = sphi 0, %s42
      %s43 = sphi 0, %s40
      %s44 = sphi 0, %s43
      %s60 = sphi 0, %s44
      %s66 = sphi 0, %s68
      %s69 = sphi 0, %s66
      %s70 = sphi 0, %s69
      %s86 = sphi 0, %s70
      %s90 = sphi 0, %s90
      %s92 = sphi 0, %s90
      %s93 = sphi 0, %s92
      %s107 = sphi 0, %s93
      %s115 = sphi 0, %s117
      %s118 = sphi 0, %s115
      %s119 = sphi 0, %s118
      %s135 = sphi 0, %s119
    $region4: #{tpu_custom_call.1} parent=1 // loop_header_branch
      %19 = sbr.rel (%p17) target = $region8
    $region5: #{tpu_custom_call.1} parent=1 // loop_body
      %s21 = ssub.s32 %s16, 1
      %s22 = ssub.s32 %s16, 2
      %s29 = sadd.s32 1, %s24
      %p30 = scmp.ge.s32.totalorder %s29, 2
      %s31 = scalar_select %p30, 0, %s29
      %s32 = sadd.s32 1, %s23
      %s33 = scalar_select %p30, %s32, %s23
      %p34 = scmp.ge.s32.totalorder %s33, 1
      %s35 = scalar_select %p34, 0, %s33
      %s36 = ssub.s32 %s24, %s31
      %s37 = ssub.s32 %s23, %s35
      %s38 = sor.u32 %s36, %s37
      %p39 = scmp.eq.s32.totalorder %s38, 0
      %s41 = sadd.s32 %s40, 1
      %s42 = scalar_select %p39, %s40, %s41
      %p45 = pneg %p39
      %p46 = scmp.eq.s32.totalorder %s16, 1
      %p47 = por %p45, %p46
      %p48 = scmp.ne.s32.totalorder %s40, %s43
      %p49 = scmp.eq.s32.totalorder %s16, 0
      %p50 = por %p48, %p49
      %p51 = scmp.ne.s32.totalorder %s40, %s43
      %p52 = scmp.eq.s32.totalorder %s21, 1
      %p53 = por %p51, %p52
      %p54 = scmp.ne.s32.totalorder %s43, %s44
      %p55 = scmp.eq.s32.totalorder %s21, 0
      %p56 = por %p54, %p55
      %p57 = scmp.ne.s32.totalorder %s43, %s44
      %p58 = scmp.eq.s32.totalorder %s22, 1
      %p59 = por %p57, %p58
      %p61 = scmp.ne.s32.totalorder %s44, %s60
      %p62 = scmp.eq.s32.totalorder %s22, 0
      %p63 = por %p61, %p62
      %s64 = ssub.s32 %s23, %s35
      %p65 = scmp.eq.s32.totalorder %s64, 0
      %s67 = sadd.s32 %s66, 1
      %s68 = scalar_select %p65, %s66, %s67
      %p71 = pneg %p65
      %p72 = scmp.eq.s32.totalorder %s16, 1
      %p73 = por %p71, %p72
      %p74 = scmp.ne.s32.totalorder %s66, %s69
      %p75 = scmp.eq.s32.totalorder %s16, 0
      %p76 = por %p74, %p75
      %p77 = scmp.ne.s32.totalorder %s66, %s69
      %p78 = scmp.eq.s32.totalorder %s21, 1
      %p79 = por %p77, %p78
      %p80 = scmp.ne.s32.totalorder %s69, %s70
      %p81 = scmp.eq.s32.totalorder %s21, 0
      %p82 = por %p80, %p81
      %p83 = scmp.ne.s32.totalorder %s69, %s70
      %p84 = scmp.eq.s32.totalorder %s22, 1
      %p85 = por %p83, %p84
      %p87 = scmp.ne.s32.totalorder %s70, %s86
      %p88 = scmp.eq.s32.totalorder %s22, 0
      %p89 = por %p87, %p88
      %s91 = sadd.s32 %s90, 1
      %p94 = scmp.eq.s32.totalorder %s16, 1
      %p95 = scmp.ne.s32.totalorder %s90, %s92
      %p96 = scmp.eq.s32.totalorder %s16, 0
      %p97 = por %p95, %p96
      %p98 = scmp.ne.s32.totalorder %s90, %s92
      %p99 = scmp.eq.s32.totalorder %s21, 1
      %p100 = por %p98, %p99
      %p101 = scmp.ne.s32.totalorder %s92, %s93
      %p102 = scmp.eq.s32.totalorder %s21, 0
      %p103 = por %p101, %p102
      %p104 = scmp.ne.s32.totalorder %s92, %s93
      %p105 = scmp.eq.s32.totalorder %s22, 1
      %p106 = por %p104, %p105
      %p108 = scmp.ne.s32.totalorder %s93, %s107
      %p109 = scmp.eq.s32.totalorder %s22, 0
      %p110 = por %p108, %p109
      %s111 = ssub.s32 %s24, %s31
      %s112 = ssub.s32 %s23, %s35
      %s113 = sor.u32 %s111, %s112
      %p114 = scmp.eq.s32.totalorder %s113, 0
      %s116 = sadd.s32 %s115, 1
      %s117 = scalar_select %p114, %s115, %s116
      %p120 = pneg %p114
      %p121 = scmp.eq.s32.totalorder %s16, 1
      %p122 = por %p120, %p121
      %p123 = scmp.ne.s32.totalorder %s115, %s118
      %p124 = scmp.eq.s32.totalorder %s16, 0
      %p125 = por %p123, %p124
      %p126 = scmp.ne.s32.totalorder %s115, %s118
      %p127 = scmp.eq.s32.totalorder %s21, 1
      %p128 = por %p126, %p127
      %p129 = scmp.ne.s32.totalorder %s118, %s119
      %p130 = scmp.eq.s32.totalorder %s21, 0
      %p131 = por %p129, %p130
      %p132 = scmp.ne.s32.totalorder %s118, %s119
      %p133 = scmp.eq.s32.totalorder %s22, 1
      %p134 = por %p132, %p133
      %p136 = scmp.ne.s32.totalorder %s119, %s135
      %p137 = scmp.eq.s32.totalorder %s22, 0
      %p138 = por %p136, %p137
      %p139 = scmp.le.s32.totalorder 1, %s16
      %p140 = scmp.lt.s32.totalorder %s16, 3
      %p141 = pnand %p139, %p140
      %p142 = pneg %p141
      // Predicated region
      $region9: #{tpu_custom_call.1} parent=5 // pred_check
        _
      $region10: #{tpu_custom_call.1} parent=5 // pred_check_branch
        %144 = sbr.rel (%p141) target = $region12
      $region11: #{tpu_custom_call.1} parent=5 // pred_region
        %s145 = ssub.s32 %s16, 1
        // Predicated region
        $region13: #{tpu_custom_call.1} parent=11 // pred_check
          %p146 = pneg %p82
        $region14: #{tpu_custom_call.1} parent=11 // pred_check_branch
          %148 = sbr.rel (%p146) target = $region16
        $region15: #{tpu_custom_call.1} parent=11 // pred_region
          %150 = vsyncadd [#allocation6], 0
          %s151 = smul.addr %s25, 4
          %s152 = scalar_lea.hbm %s1, %s151
          %s154 = sshll.u32 %s152, 4
          %s155 = int_to_ptr.hbm [resolvable:$true] %s154
          %s156 = sshll.u32 [#allocation5], 4
          %s157 = int_to_ptr.vmem [resolvable:$true] %s156
          %159 = dma.hbm_to_vmem [thread:$0]  %s155, 64, %s157, [#allocation6]
        $region16: #{tpu_custom_call.1} parent=11 // pred_fallthru
          _
        // Predicated region
        $region17: #{tpu_custom_call.1} parent=11 // pred_check
          %p160 = pneg %p103
        $region18: #{tpu_custom_call.1} parent=11 // pred_check_branch
          %162 = sbr.rel (%p160) target = $region20
        $region19: #{tpu_custom_call.1} parent=11 // pred_region
          _
        $region20: #{tpu_custom_call.1} parent=11 // pred_fallthru
          _
      $region12: #{tpu_custom_call.1} parent=5 // pred_fallthru
        _
      %p163 = scmp.lt.s32.totalorder %s16, 2
      // Predicated region
      $region21: #{tpu_custom_call.1} parent=5 // pred_check
        %p164 = pneg %p163
      $region22: #{tpu_custom_call.1} parent=5 // pred_check_branch
        %166 = sbr.rel (%p164) target = $region24
      $region23: #{tpu_custom_call.1} parent=5 // pred_region
        // Predicated region
        $region25: #{tpu_custom_call.1} parent=23 // pred_check
          %p167 = pneg %p50
        $region26: #{tpu_custom_call.1} parent=23 // pred_check_branch
          %169 = sbr.rel (%p167) target = $region28
        $region27: #{tpu_custom_call.1} parent=23 // pred_region
          %s170 = sand.u32 %s40, 1
          %s171 = scalar_lea.sflag [#allocation3], %s170
          %s172 = sand.u32 %s40, 1
          %s173 = smul.addr %s172, 4
          %s174 = scalar_lea.vmem [#allocation2], %s173
          %176 = vsyncadd %s171, 0
          %s177 = sadd.s32 %s23, %s24
          %s178 = smul.addr %s177, 4
          %s179 = scalar_lea.hbm %s0, %s178
          %s181 = sshll.u32 %s179, 4
          %s182 = int_to_ptr.hbm [resolvable:$true] %s181
          %s183 = sshll.u32 %s174, 4
          %s184 = int_to_ptr.vmem [resolvable:$true] %s183
          %186 = dma.hbm_to_vmem [thread:$0]  %s182, 64, %s184, %s171
        $region28: #{tpu_custom_call.1} parent=23 // pred_fallthru
          _
      $region24: #{tpu_custom_call.1} parent=5 // pred_fallthru
        _
      %p187 = scmp.le.s32.totalorder 1, %s16
      %p188 = scmp.lt.s32.totalorder %s16, 3
      %p189 = pnand %p187, %p188
      %p190 = pneg %p189
      // Predicated region
      $region29: #{tpu_custom_call.1} parent=5 // pred_check
        _
      $region30: #{tpu_custom_call.1} parent=5 // pred_check_branch
        %192 = sbr.rel (%p189) target = $region32
      $region31: #{tpu_custom_call.1} parent=5 // pred_region
        %s193 = ssub.s32 %s16, 1
        %s194 = sand.u32 %s43, 1
        %s195 = scalar_lea.sflag [#allocation3], %s194
        %s196 = sand.u32 %s43, 1
        %s197 = smul.addr %s196, 4
        %s198 = scalar_lea.vmem [#allocation2], %s197
        // Predicated region
        $region33: #{tpu_custom_call.1} parent=31 // pred_check
          %p199 = pneg %p56
        $region34: #{tpu_custom_call.1} parent=31 // pred_check_branch
          %201 = sbr.rel (%p199) target = $region36
        $region35: #{tpu_custom_call.1} parent=31 // pred_region
          %203 = dma.done %s195, 64
        $region36: #{tpu_custom_call.1} parent=31 // pred_fallthru
          _
        // Predicated region
        $region37: #{tpu_custom_call.1} parent=31 // pred_check
          %p204 = pneg %p82
        $region38: #{tpu_custom_call.1} parent=31 // pred_check_branch
          %206 = sbr.rel (%p204) target = $region40
        $region39: #{tpu_custom_call.1} parent=31 // pred_region
          %208 = dma.done [#allocation6], 64
        $region40: #{tpu_custom_call.1} parent=31 // pred_fallthru
          _
        %s209 = sand.u32 %s43, 1
        %s210 = scalar_lea.sflag [#allocation3], %s209
        %s211 = sand.u32 %s43, 1
        %s212 = smul.addr %s211, 4
        %s213 = scalar_lea.vmem [#allocation2], %s212
        %p214 = pneg %p56
        %p215 = pneg %p53
        %p216 = pneg %p82
        %p217 = pneg %p79
        %p218 = pneg %p103
        %p219 = pneg %p100
        %p220 = pneg %p131
        %p221 = pneg %p128
        %s222 = sand.u32 %s118, 1
        %s223 = scalar_lea.sflag [#allocation4], %s222
        %s224 = sand.u32 %s118, 1
        %s225 = smul.addr %s224, 4
        %s226 = scalar_lea.vmem [#allocation7], %s225
        %v227 = vld [vmem:[%s198] sm:$0xf]
        %v228 = vld [vmem:[#allocation5] sm:$0xf]
        %v229 = vld [vmem:[%s2] sm:$0x1]
        %231 = vrot.lane.b32.xlu0 %v227, 3
        %v232 = vpop.permute.xlu0 %231
        %vm234 = vcmask 23552
        %v235 = vsel %vm234, 0.0, %v232
        %v236 = vsel %vm234, %v232, 0.0
        %vm237 = vcmp.ge.s32.totalorder %v229, 3
        %v238 = vsel %vm237, 1, 0
        %v239 = vperm.slane %v238, 0
        %vm240 = vcmp.eq.s32.totalorder %v239, 1
        %v241 = vsel %vm240, %v235, 0.0
        %243 = vset.pattern.permute.xlu0 0
        %244 = vperm.xlu0 %243, %v228
        %v245 = vpop.permute.xlu0 %244
        %v247 = vmul.f32 %v241, %v245
        %vm248 = vcmp.ge.s32.totalorder %v229, 2
        %v249 = vsel %vm248, 1, 0
        %v250 = vperm.slane %v249, 0
        %vm251 = vcmp.eq.s32.totalorder %v250, 1
        %254 = vrot.lane.b32.xlu0 %v235, 127
        %v255 = vpop.permute.xlu0 %254
        %256 = vrot.lane.b32.xlu0 %v236, 127
        %v257 = vpop.permute.xlu0 %256
        %vm258 = vcmask 1039360
        %v259 = vsel %vm258, %v255, %v257
        %v261 = vsel %vm251, %v259, 0.0
        %262 = vset.pattern.permute.xlu0 1
        %263 = vperm.xlu0 %262, %v228
        %v264 = vpop.permute.xlu0 %263
        %v266 = vmul.f32 %v261, %v264
        %v267 = vadd.f32 %v247, %v266
        %vm268 = vcmp.ge.s32.totalorder %v229, 1
        %v269 = vsel %vm268, 1, 0
        %v270 = vperm.slane %v269, 0
        %vm271 = vcmp.eq.s32.totalorder %v270, 1
        %272 = vrot.lane.b32.xlu0 %v235, 126
        %v273 = vpop.permute.xlu0 %272
        %274 = vrot.lane.b32.xlu0 %v236, 126
        %v275 = vpop.permute.xlu0 %274
        %vm276 = vcmask 1031168
        %v277 = vsel %vm276, %v273, %v275
        %v279 = vsel %vm271, %v277, 0.0
        %280 = vset.pattern.permute.xlu0 2
        %281 = vperm.xlu0 %280, %v228
        %v282 = vpop.permute.xlu0 %281
        %v284 = vmul.f32 %v279, %v282
        %v285 = vadd.f32 %v267, %v284
        %286 = vset.pattern.permute.xlu0 3
        %287 = vperm.xlu0 %286, %v228
        %v288 = vpop.permute.xlu0 %287
        %v290 = vmul.f32 %v235, %v288
        %v291 = vmul.f32 %v236, %v288
        %294 = vrot.lane.b32.xlu0 %v290, 125
        %v295 = vpop.permute.xlu0 %294
        %296 = vrot.lane.b32.xlu0 %v291, 125
        %v297 = vpop.permute.xlu0 %296
        %vm298 = vcmask 1022976
        %v299 = vsel %vm298, %v295, %v297
        %v301 = vadd.f32 %v285, %v299
        %vm302 = vcmp.lt.s32.totalorder %v229, 15
        %v303 = vsel %vm302, 1, 0
        %v304 = vperm.slane %v303, 0
        %vm305 = vcmp.eq.s32.totalorder %v304, 1
        %306 = vrot.lane.b32.xlu0 %v235, 124
        %v307 = vpop.permute.xlu0 %306
        %308 = vrot.lane.b32.xlu0 %v236, 124
        %v309 = vpop.permute.xlu0 %308
        %vm310 = vcmask 1014784
        %v311 = vsel %vm310, %v307, %v309
        %v313 = vsel %vm305, %v311, 0.0
        %314 = vset.pattern.permute.xlu0 4
        %315 = vperm.xlu0 %314, %v228
        %v316 = vpop.permute.xlu0 %315
        %v318 = vmul.f32 %v313, %v316
        %v319 = vadd.f32 %v301, %v318
        %vm320 = vcmp.lt.s32.totalorder %v229, 14
        %v321 = vsel %vm320, 1, 0
        %v322 = vperm.slane %v321, 0
        %vm323 = vcmp.eq.s32.totalorder %v322, 1
        %324 = vrot.lane.b32.xlu0 %v235, 123
        %v325 = vpop.permute.xlu0 %324
        %326 = vrot.lane.b32.xlu0 %v236, 123
        %v327 = vpop.permute.xlu0 %326
        %vm328 = vcmask 1006592
        %v329 = vsel %vm328, %v325, %v327
        %v331 = vsel %vm323, %v329, 0.0
        %332 = vset.pattern.permute.xlu0 5
        %333 = vperm.xlu0 %332, %v228
        %v334 = vpop.permute.xlu0 %333
        %v336 = vmul.f32 %v331, %v334
        %v337 = vadd.f32 %v319, %v336
        %vm338 = vcmp.lt.s32.totalorder %v229, 13
        %v339 = vsel %vm338, 1, 0
        %v340 = vperm.slane %v339, 0
        %vm341 = vcmp.eq.s32.totalorder %v340, 1
        %342 = vrot.lane.b32.xlu0 %v235, 122
        %v343 = vpop.permute.xlu0 %342
        %344 = vrot.lane.b32.xlu0 %v236, 122
        %v345 = vpop.permute.xlu0 %344
        %vm346 = vcmask 998400
        %v347 = vsel %vm346, %v343, %v345
        %v349 = vsel %vm341, %v347, 0.0
        %350 = vset.pattern.permute.xlu0 6
        %351 = vperm.xlu0 %350, %v228
        %v352 = vpop.permute.xlu0 %351
        %v354 = vmul.f32 %v349, %v352
        %v355 = vadd.f32 %v337, %v354
        %356 = vst [vmem:[%s226] sm:$0xf] %v355
        %s357 = sand.u32 %s118, 1
        %s358 = scalar_lea.sflag [#allocation4], %s357
        %s359 = sand.u32 %s118, 1
        %s360 = smul.addr %s359, 4
        %s361 = scalar_lea.vmem [#allocation7], %s360
        // Predicated region
        $region41: #{tpu_custom_call.1} parent=31 // pred_check
          %p362 = pneg %p128
        $region42: #{tpu_custom_call.1} parent=31 // pred_check_branch
          %364 = sbr.rel (%p362) target = $region44
        $region43: #{tpu_custom_call.1} parent=31 // pred_region
          %366 = vsyncadd %s358, 0
          %s367 = sadd.s32 %s25, %s26
          %s368 = smul.addr %s367, 4
          %s369 = scalar_lea.hbm %s3, %s368
          %s371 = sshll.u32 %s361, 4
          %s372 = int_to_ptr.vmem [resolvable:$true] %s371
          %s373 = sshll.u32 %s369, 4
          %s374 = int_to_ptr.hbm [resolvable:$true] %s373
          %376 = dma.vmem_to_hbm [thread:$0]  %s372, 64, %s374, %s358
        $region44: #{tpu_custom_call.1} parent=31 // pred_fallthru
          _
      $region32: #{tpu_custom_call.1} parent=5 // pred_fallthru
        _
      %p377 = scmp.le.s32.totalorder 2, %s16
      // Predicated region
      $region45: #{tpu_custom_call.1} parent=5 // pred_check
        %p378 = pneg %p377
      $region46: #{tpu_custom_call.1} parent=5 // pred_check_branch
        %380 = sbr.rel (%p378) target = $region48
      $region47: #{tpu_custom_call.1} parent=5 // pred_region
        %s381 = ssub.s32 %s16, 2
        // Predicated region
        $region49: #{tpu_custom_call.1} parent=47 // pred_check
          %p382 = pneg %p134
        $region50: #{tpu_custom_call.1} parent=47 // pred_check_branch
          %384 = sbr.rel (%p382) target = $region52
        $region51: #{tpu_custom_call.1} parent=47 // pred_region
          %s385 = sand.u32 %s119, 1
          %s386 = scalar_lea.sflag [#allocation4], %s385
          %s387 = sand.u32 %s119, 1
          %s388 = smul.addr %s387, 4
          %s389 = scalar_lea.vmem [#allocation7], %s388
          %391 = dma.done %s386, 64
        $region52: #{tpu_custom_call.1} parent=47 // pred_fallthru
          _
      $region48: #{tpu_custom_call.1} parent=5 // pred_fallthru
        _
    $region6: #{tpu_custom_call.1} parent=1 // loop_footer
      %s20 = sadd.s32 1, %s16
    $region7: #{tpu_custom_call.1} parent=1 // loop_footer_branch
      %15 = sbr.rel target = $region3
    $region8: #{tpu_custom_call.1} parent=1 // loop_exit
      _
    %392 = vsyncpa [#allocation3], 1
    %s393 = scalar_lea.sflag [#allocation3], 1
    %394 = vsyncpa %s393, 1
    %395 = vsyncpa [#allocation6], 1
    %396 = vsyncpa [#allocation4], 1
    %s397 = scalar_lea.sflag [#allocation4], 1
    %398 = vsyncpa %s397, 1

</llo_original>
